<compile_context>
chip_gen: v5e
topology: v5e:2x2
jax: 0.10.0
libtpu: 0.0.40
codegen_flags: <defaults>
</compile_context>

<pallas_src>
import functools
import math

import jax
import jax.numpy as jnp
from jax import lax
from jax.experimental import pallas as pl
from jax.experimental.pallas import tpu as pltpu


def _round_up(x, m):
    return (x + m - 1) // m * m


def _norm_softmax_loss_kernel(tgt_ref, emb_ref, w_ref, out_ref,
                              m_sc, l_sc, t_sc, *,
                              inv_temp, n_real, tile_n):
    k = pl.program_id(1)                    # N-tile index (reduction axis)
    n_tiles = pl.num_programs(1)

    @pl.when(k == 0)
    def _():
        m_sc[...] = jnp.full_like(m_sc, -jnp.inf)
        l_sc[...] = jnp.zeros_like(l_sc)
        t_sc[...] = jnp.zeros_like(t_sc)

    emb = emb_ref[...]                      # (TILE_B, D), input dtype
    w = w_ref[...]                          # (TILE_N, D), input dtype

    # Per-class inverse L2 norm fused with 1/temperature, in f32.
    # ones(1, D) @ (w*w)^T puts the squared norms directly along the lane
    # dimension -> no cross-lane transpose of the reduction result.
    w_f32 = w.astype(jnp.float32)
    sq_row = lax.dot_general(
        jnp.ones((1, w_f32.shape[1]), jnp.float32), w_f32 * w_f32,
        dimension_numbers=(((1,), (1,)), ((), ())),
        preferred_element_type=jnp.float32)                # (1, TILE_N)
    scale = lax.rsqrt(jnp.maximum(sq_row, 1e-24)) * inv_temp

    # MXU matmul contracting dim 1 of both operands (no explicit transpose).
    logits = lax.dot_general(
        emb, w, dimension_numbers=(((1,), (1,)), ((), ())),
        preferred_element_type=jnp.float32)                # (TILE_B, TILE_N)
    logits = logits * scale                                # fused norm + 1/T

    # Global class index of every column in this tile; mask padded classes.
    col = lax.broadcasted_iota(jnp.int32, logits.shape, 1) + k * tile_n
    logits = jnp.where(col < n_real, logits, -jnp.inf)

    # Target logit: each row's target falls in exactly one N tile.
    tgt = tgt_ref[...]                                     # (TILE_B, 1) int32
    t_sc[...] += jnp.sum(jnp.where(col == tgt, logits, 0.0),
                         axis=1, keepdims=True)

    # Online (streamed) logsumexp across the N tiles.
    m_prev = m_sc[...]
    m_new = jnp.maximum(m_prev, jnp.max(logits, axis=1, keepdims=True))
    alpha = jnp.exp(m_prev - m_new)
    l_sc[...] = alpha * l_sc[...] + jnp.sum(jnp.exp(logits - m_new),
                                            axis=1, keepdims=True)
    m_sc[...] = m_new

    @pl.when(k == n_tiles - 1)
    def _():
        per_row = m_sc[...] + jnp.log(l_sc[...]) - t_sc[...]   # (TILE_B, 1)
        out_ref[...] = jnp.broadcast_to(per_row, out_ref.shape)


def norm_softmax_loss(embeddings, weight, instance_targets, temperature=0.05,
                      tile_n=128, tile_b=128):
    """embeddings: (B, D), weight: (N, D), instance_targets: (B,) int."""
    B, D = embeddings.shape
    N, d_w = weight.shape
    assert D == d_w

    # Tile sizes: lane-friendly N tiles (multiple of 128), sublane-friendly B.
    tile_b = min(tile_b, _round_up(B, 8))
    b_pad = _round_up(B, tile_b)
    tile_n = min(tile_n, _round_up(N, 128))
    n_pad = _round_up(N, tile_n)

    # Pad only what the tiling requires (no dtype up-casting in the wrapper).
    emb_p = embeddings
    if b_pad != B:
        emb_p = jnp.zeros((b_pad, D), embeddings.dtype).at[:B].set(embeddings)
    w_p = weight
    if n_pad != N:
        w_p = jnp.zeros((n_pad, D), weight.dtype).at[:N].set(weight)
    tgt_p = jnp.zeros((b_pad, 1), jnp.int32).at[:B, 0].set(
        instance_targets.astype(jnp.int32))

    grid = (b_pad // tile_b, n_pad // tile_n)

    kernel = functools.partial(
        _norm_softmax_loss_kernel,
        inv_temp=float(1.0 / temperature), n_real=N, tile_n=tile_n)

    per_row = pl.pallas_call(
        kernel,
        out_shape=jax.ShapeDtypeStruct((b_pad, 128), jnp.float32),
        grid_spec=pltpu.PrefetchScalarGridSpec(
            num_scalar_prefetch=0,
            grid=grid,
            in_specs=[
                pl.BlockSpec((tile_b, 1), lambda i, k: (i, 0)),   # targets
                pl.BlockSpec((tile_b, D), lambda i, k: (i, 0)),   # embeddings
                pl.BlockSpec((tile_n, D), lambda i, k: (k, 0)),   # weight tile
            ],
            out_specs=pl.BlockSpec((tile_b, 128), lambda i, k: (i, 0)),
            scratch_shapes=[
                pltpu.VMEM((tile_b, 1), jnp.float32),   # running max
                pltpu.VMEM((tile_b, 1), jnp.float32),   # running sum(exp)
                pltpu.VMEM((tile_b, 1), jnp.float32),   # target logit
            ],
        ),
        compiler_params=pltpu.CompilerParams(
            dimension_semantics=("parallel", "arbitrary")),
    )(tgt_p, emb_p, w_p)

    # Mean over the real (unpadded) rows; 1/B folded into a constant multiply.
    return jnp.sum(per_row[:B, 0]) * (1.0 / B)


def _reference_loss(embeddings, weight, instance_targets, temperature):
    wn = weight / jnp.maximum(
        jnp.linalg.norm(weight, axis=1, keepdims=True), 1e-12)
    logits = (embeddings @ wn.T) / temperature
    lse = jax.nn.logsumexp(logits, axis=1)
    tgt = jnp.take_along_axis(logits, instance_targets[:, None], axis=1)[:, 0]
    return jnp.mean(lse - tgt)


if __name__ == "__main__":
    temperature = 0.05

    # Config 1: small shapes consistent with the module (dim=32, 16 classes).
    B, D, N = 8, 32, 16
    key = jax.random.PRNGKey(0)
    k_emb, k_w, k_tgt = jax.random.split(key, 3)
    stdv = 1.0 / math.sqrt(D)
    weight = jax.random.uniform(k_w, (N, D), minval=-stdv, maxval=stdv,
                                dtype=jnp.float32)
    embeddings = jax.random.normal(k_emb, (B, D), dtype=jnp.float32)
    targets = jax.random.randint(k_tgt, (B,), 0, N, dtype=jnp.int32)

    loss = norm_softmax_loss(embeddings, weight, targets, temperature)
    jax.block_until_ready(loss)
    ref = _reference_loss(embeddings, weight, targets, temperature)
    assert jnp.allclose(loss, ref, atol=1e-3, rtol=1e-4), (loss, ref)

    # Config 2: exercises N tiling (3 weight tiles) and class/batch padding.
    B2, D2, N2 = 24, 64, 300
    k_emb2, k_w2, k_tgt2 = jax.random.split(jax.random.PRNGKey(1), 3)
    stdv2 = 1.0 / math.sqrt(D2)
    weight2 = jax.random.uniform(k_w2, (N2, D2), minval=-stdv2, maxval=stdv2,
                                 dtype=jnp.float32)
    embeddings2 = jax.random.normal(k_emb2, (B2, D2), dtype=jnp.float32)
    targets2 = jax.random.randint(k_tgt2, (B2,), 0, N2, dtype=jnp.int32)

    loss2 = norm_softmax_loss(embeddings2, weight2, targets2, temperature)
    jax.block_until_ready(loss2)
    ref2 = _reference_loss(embeddings2, weight2, targets2, temperature)
    assert jnp.allclose(loss2, ref2, atol=1e-3, rtol=1e-4), (loss2, ref2)

    print("KERNEL_OK")
</pallas_src>

<mosaic_0001>
module attributes {stable_mosaic.version = 11 : i64} {
  func.func @_norm_softmax_loss_kernel(%arg0: i32, %arg1: i32, %arg2: memref<8x1xi32, #tpu.memory_space<vmem>>, %arg3: memref<8x32xf32, #tpu.memory_space<vmem>>, %arg4: memref<128x32xf32, #tpu.memory_space<vmem>>, %arg5: memref<8x128xf32, #tpu.memory_space<vmem>>, %arg6: memref<8x1xf32, #tpu.memory_space<vmem>>, %arg7: memref<8x1xf32, #tpu.memory_space<vmem>>, %arg8: memref<8x1xf32, #tpu.memory_space<vmem>>) attributes {dimension_semantics = [#tpu.dimension_semantics<parallel>, #tpu.dimension_semantics<arbitrary>], iteration_bounds = array<i64: 1, 1>, scalar_prefetch = 0 : i64, scratch_operands = 3 : i64, tpu.core_type = #tpu.core_type<tc>, window_params = [{transform_indices = @transform_0, window_bounds = array<i64: 8, 1>}, {transform_indices = @transform_1, window_bounds = array<i64: 8, 32>}, {transform_indices = @transform_2, window_bounds = array<i64: 128, 32>}, {transform_indices = @transform_3, window_bounds = array<i64: 8, 128>}]} {
    %c0_i32 = arith.constant 0 : i32
    %0 = arith.cmpi eq, %arg1, %c0_i32 : i32
    %1 = arith.extui %0 : i1 to i32
    %c0_i32_0 = arith.constant 0 : i32
    %2 = arith.cmpi ne, %1, %c0_i32_0 : i32
    scf.if %2 {
      %cst_29 = arith.constant 0xFF800000 : f32
      %53 = vector.broadcast %cst_29 : f32 to vector<8x1xf32>
      %c0_30 = arith.constant 0 : index
      %c0_31 = arith.constant 0 : index
      %54 = vector.load %arg6[%c0_30, %c0_31] : memref<8x1xf32, #tpu.memory_space<vmem>>, vector<8x1xf32>
      tpu.vector_store %arg6[%c0_30, %c0_31], %53 {strides = array<i32>} : memref<8x1xf32, #tpu.memory_space<vmem>>, vector<8x1xf32>,
      %cst_32 = arith.constant 0.000000e+00 : f32
      %55 = vector.broadcast %cst_32 : f32 to vector<8x1xf32>
      %c0_33 = arith.constant 0 : index
      %c0_34 = arith.constant 0 : index
      %56 = vector.load %arg7[%c0_33, %c0_34] : memref<8x1xf32, #tpu.memory_space<vmem>>, vector<8x1xf32>
      tpu.vector_store %arg7[%c0_33, %c0_34], %55 {strides = array<i32>} : memref<8x1xf32, #tpu.memory_space<vmem>>, vector<8x1xf32>,
      %cst_35 = arith.constant 0.000000e+00 : f32
      %57 = vector.broadcast %cst_35 : f32 to vector<8x1xf32>
      %c0_36 = arith.constant 0 : index
      %c0_37 = arith.constant 0 : index
      %58 = vector.load %arg8[%c0_36, %c0_37] : memref<8x1xf32, #tpu.memory_space<vmem>>, vector<8x1xf32>
      tpu.vector_store %arg8[%c0_36, %c0_37], %57 {strides = array<i32>} : memref<8x1xf32, #tpu.memory_space<vmem>>, vector<8x1xf32>,
    } else {
    }
    %c0 = arith.constant 0 : index
    %c0_1 = arith.constant 0 : index
    %3 = vector.load %arg3[%c0, %c0_1] : memref<8x32xf32, #tpu.memory_space<vmem>>, vector<8x32xf32>
    %c0_2 = arith.constant 0 : index
    %c0_3 = arith.constant 0 : index
    %4 = vector.load %arg4[%c0_2, %c0_3] : memref<128x32xf32, #tpu.memory_space<vmem>>, vector<128x32xf32>
    %cst = arith.constant 1.000000e+00 : f32
    %5 = vector.broadcast %cst : f32 to vector<1x32xf32>
    %6 = arith.mulf %4, %4 : vector<128x32xf32>
    %cst_4 = arith.constant dense<0.000000e+00> : vector<1x128xf32>
    %7 = tpu.matmul %5, %6, %cst_4 {dimension_numbers = #tpu.dot_dimension_numbers<[1], [1], [0], [0], [0, 0, 1, 0], [], []>} : vector<1x32xf32>, vector<128x32xf32>, vector<1x128xf32> -> vector<1x128xf32>
    %cst_5 = arith.constant 1.000000e-24 : f32
    %8 = vector.broadcast %cst_5 : f32 to vector<1x128xf32>
    %9 = arith.maximumf %7, %8 : vector<1x128xf32>
    %10 = math.rsqrt %9 : vector<1x128xf32>
    %cst_6 = arith.constant 2.000000e+01 : f32
    %11 = vector.broadcast %cst_6 : f32 to vector<1x128xf32>
    %12 = arith.mulf %10, %11 : vector<1x128xf32>
    %cst_7 = arith.constant dense<0.000000e+00> : vector<8x128xf32>
    %13 = tpu.matmul %3, %4, %cst_7 {dimension_numbers = #tpu.dot_dimension_numbers<[1], [1], [0], [0], [0, 0, 1, 0], [], []>} : vector<8x32xf32>, vector<128x32xf32>, vector<8x128xf32> -> vector<8x128xf32>
    %14 = vector.broadcast %12 : vector<1x128xf32> to vector<8x128xf32>
    %15 = arith.mulf %13, %14 : vector<8x128xf32>
    %16 = tpu.iota {dimensions = array<i32: 1>} : vector<8x128xi32>
    %c128_i32 = arith.constant 128 : i32
    %17 = arith.muli %arg1, %c128_i32 : i32
    %18 = vector.broadcast %17 : i32 to vector<8x128xi32>
    %19 = arith.addi %16, %18 : vector<8x128xi32>
    %c16_i32 = arith.constant 16 : i32
    %20 = vector.broadcast %c16_i32 : i32 to vector<8x128xi32>
    %21 = arith.cmpi slt, %19, %20 : vector<8x128xi32>
    %cst_8 = arith.constant 0xFF800000 : f32
    %22 = vector.broadcast %cst_8 : f32 to vector<8x128xf32>
    %23 = arith.select %21, %15, %22 : vector<8x128xi1>, vector<8x128xf32>
    %c0_9 = arith.constant 0 : index
    %c0_10 = arith.constant 0 : index
    %24 = vector.load %arg2[%c0_9, %c0_10] : memref<8x1xi32, #tpu.memory_space<vmem>>, vector<8x1xi32>
    %c0_11 = arith.constant 0 : index
    %c0_12 = arith.constant 0 : index
    %25 = vector.load %arg8[%c0_11, %c0_12] : memref<8x1xf32, #tpu.memory_space<vmem>>, vector<8x1xf32>
    %26 = vector.broadcast %24 : vector<8x1xi32> to vector<8x128xi32>
    %27 = arith.cmpi eq, %19, %26 : vector<8x128xi32>
    %cst_13 = arith.constant 0.000000e+00 : f32
    %28 = vector.broadcast %cst_13 : f32 to vector<8x128xf32>
    %29 = arith.select %27, %23, %28 : vector<8x128xi1>, vector<8x128xf32>
    %cst_14 = arith.constant dense<0.000000e+00> : vector<8xf32>
    %30 = vector.multi_reduction <add>, %29, %cst_14 [1] : vector<8x128xf32> to vector<8xf32>
    %31 = vector.shape_cast %30 : vector<8xf32> to vector<8x1xf32>
    %32 = arith.addf %25, %31 : vector<8x1xf32>
    %c0_15 = arith.constant 0 : index
    %c0_16 = arith.constant 0 : index
    %33 = vector.load %arg8[%c0_15, %c0_16] : memref<8x1xf32, #tpu.memory_space<vmem>>, vector<8x1xf32>
    tpu.vector_store %arg8[%c0_15, %c0_16], %32 {strides = array<i32>} : memref<8x1xf32, #tpu.memory_space<vmem>>, vector<8x1xf32>,
    %c0_17 = arith.constant 0 : index
    %c0_18 = arith.constant 0 : index
    %34 = vector.load %arg6[%c0_17, %c0_18] : memref<8x1xf32, #tpu.memory_space<vmem>>, vector<8x1xf32>
    %cst_19 = arith.constant dense<0xFF800000> : vector<8xf32>
    %35 = vector.multi_reduction <maximumf>, %23, %cst_19 [1] : vector<8x128xf32> to vector<8xf32>
    %36 = vector.shape_cast %35 : vector<8xf32> to vector<8x1xf32>
    %37 = arith.maximumf %34, %36 : vector<8x1xf32>
    %38 = arith.subf %34, %37 : vector<8x1xf32>
    %39 = math.exp %38 : vector<8x1xf32>
    %c0_20 = arith.constant 0 : index
    %c0_21 = arith.constant 0 : index
    %40 = vector.load %arg7[%c0_20, %c0_21] : memref<8x1xf32, #tpu.memory_space<vmem>>, vector<8x1xf32>
    %41 = arith.mulf %39, %40 : vector<8x1xf32>
    %42 = vector.broadcast %37 : vector<8x1xf32> to vector<8x128xf32>
    %43 = arith.subf %23, %42 : vector<8x128xf32>
    %44 = math.exp %43 : vector<8x128xf32>
    %cst_22 = arith.constant dense<0.000000e+00> : vector<8xf32>
    %45 = vector.multi_reduction <add>, %44, %cst_22 [1] : vector<8x128xf32> to vector<8xf32>
    %46 = vector.shape_cast %45 : vector<8xf32> to vector<8x1xf32>
    %47 = arith.addf %41, %46 : vector<8x1xf32>
    %c0_23 = arith.constant 0 : index
    %c0_24 = arith.constant 0 : index
    %48 = vector.load %arg7[%c0_23, %c0_24] : memref<8x1xf32, #tpu.memory_space<vmem>>, vector<8x1xf32>
    tpu.vector_store %arg7[%c0_23, %c0_24], %47 {strides = array<i32>} : memref<8x1xf32, #tpu.memory_space<vmem>>, vector<8x1xf32>,
    %c0_25 = arith.constant 0 : index
    %c0_26 = arith.constant 0 : index
    %49 = vector.load %arg6[%c0_25, %c0_26] : memref<8x1xf32, #tpu.memory_space<vmem>>, vector<8x1xf32>
    tpu.vector_store %arg6[%c0_25, %c0_26], %37 {strides = array<i32>} : memref<8x1xf32, #tpu.memory_space<vmem>>, vector<8x1xf32>,
    %c0_i32_27 = arith.constant 0 : i32
    %50 = arith.cmpi eq, %arg1, %c0_i32_27 : i32
    %51 = arith.extui %50 : i1 to i32
    %c0_i32_28 = arith.constant 0 : i32
    %52 = arith.cmpi ne, %51, %c0_i32_28 : i32
    scf.if %52 {
      %c0_29 = arith.constant 0 : index
      %c0_30 = arith.constant 0 : index
      %53 = vector.load %arg6[%c0_29, %c0_30] : memref<8x1xf32, #tpu.memory_space<vmem>>, vector<8x1xf32>
      %c0_31 = arith.constant 0 : index
      %c0_32 = arith.constant 0 : index
      %54 = vector.load %arg7[%c0_31, %c0_32] : memref<8x1xf32, #tpu.memory_space<vmem>>, vector<8x1xf32>
      %55 = math.log %54 : vector<8x1xf32>
      %56 = arith.addf %53, %55 : vector<8x1xf32>
      %c0_33 = arith.constant 0 : index
      %c0_34 = arith.constant 0 : index
      %57 = vector.load %arg8[%c0_33, %c0_34] : memref<8x1xf32, #tpu.memory_space<vmem>>, vector<8x1xf32>
      %58 = arith.subf %56, %57 : vector<8x1xf32>
      %59 = vector.shape_cast %58 : vector<8x1xf32> to vector<8x1xf32>
      %60 = vector.broadcast %59 : vector<8x1xf32> to vector<8x128xf32>
      %c0_35 = arith.constant 0 : index
      %c0_36 = arith.constant 0 : index
      %61 = vector.load %arg5[%c0_35, %c0_36] : memref<8x128xf32, #tpu.memory_space<vmem>>, vector<8x128xf32>
      tpu.vector_store %arg5[%c0_35, %c0_36], %60 {strides = array<i32>} : memref<8x128xf32, #tpu.memory_space<vmem>>, vector<8x128xf32>,
    } else {
    }
    return
  }
  func.func @transform_0(%arg0: i32, %arg1: i32) -> (i32, i32) {
    %c0_i32 = arith.constant 0 : i32
    %c0_i32_0 = arith.constant 0 : i32
    return %arg0, %c0_i32 : i32, i32
  }
  func.func @transform_1(%arg0: i32, %arg1: i32) -> (i32, i32) {
    %c0_i32 = arith.constant 0 : i32
    %c0_i32_0 = arith.constant 0 : i32
    return %arg0, %c0_i32 : i32, i32
  }
  func.func @transform_2(%arg0: i32, %arg1: i32) -> (i32, i32) {
    %c0_i32 = arith.constant 0 : i32
    %c0_i32_0 = arith.constant 0 : i32
    return %arg1, %c0_i32 : i32, i32
  }
  func.func @transform_3(%arg0: i32, %arg1: i32) -> (i32, i32) {
    %c0_i32 = arith.constant 0 : i32
    %c0_i32_0 = arith.constant 0 : i32
    return %arg0, %c0_i32 : i32, i32
  }
}

</mosaic_0001>

<llo_original>
// kernel: tpu_custom_call.1
$region0: #{tpu_custom_call.1}
  #allocation0 [shape = 'u32[]', space=smem, size = 0x4, offset = 0x4, fixed_abs, tag = 'smem constant byte address 0x4 - core index']
  #allocation1 [shape = 'u32[72,128]{1,0:T(1,128)}', space=vmem, size = 0x9000, scoped, tag = 'internal scratch']
  #allocation2 [shape = 'f32[8,1]{1,0:T(8,128)}', space=vmem, size = 0x1000, scoped, tag = 'scratch operand']
  #allocation3 [shape = 'f32[8,1]{1,0:T(8,128)}', space=vmem, size = 0x1000, scoped, tag = 'scratch operand']
  #allocation4 [shape = 'f32[8,1]{1,0:T(8,128)}', space=vmem, size = 0x1000, scoped, tag = 'scratch operand']
  %s0 = inlined_call_operand.vmem [shape: s32[8,1], index: 0, kind: input, shape index: {}]
  %s1 = inlined_call_operand.vmem [shape: f32[8,32], index: 1, kind: input, shape index: {}]
  %s2 = inlined_call_operand.vmem [shape: f32[128,32], index: 2, kind: input, shape index: {}]
  %s3 = inlined_call_operand.hbm [shape: f32[8,128], index: 3, kind: output, shape index: {}]
  %s4 = sld [smem:[#allocation0]]
  $region30: #{tpu_custom_call.1} parent=0
    _
  %s6 = ssub.s32 1, %s4
  %s7 = scalar_select 0, %s6, %s4
  $region1: #{tpu_custom_call.1} parent=0
    #allocation5 [shape = 'u8[4096]{0}', space=vmem, size = 0x1000, scoped, tag = 'output window, operand 0, single buffered']
    #allocation6 [shape = 's32[1]{0}', space=sflag, size = 0x4, scoped, tag = 'scoped memory for tpu_custom_call.1']
    %8 = vsyncpa [#allocation6], 0
    // Predicated region
    $region2: #{tpu_custom_call.1} parent=1 // pred_check
      _
    $region3: #{tpu_custom_call.1} parent=1 // pred_check_branch
      %10 = sbr.rel (0) target = $region5
    $region4: #{tpu_custom_call.1} parent=1 // pred_region
      _
    $region5: #{tpu_custom_call.1} parent=1 // pred_fallthru
      _
    // Predicated region
    $region6: #{tpu_custom_call.1} parent=1 // pred_check
      _
    $region7: #{tpu_custom_call.1} parent=1 // pred_check_branch
      %12 = sbr.rel (0) target = $region9
    $region8: #{tpu_custom_call.1} parent=1 // pred_region
      _
    $region9: #{tpu_custom_call.1} parent=1 // pred_fallthru
      _
    // Predicated region
    $region10: #{tpu_custom_call.1} parent=1 // pred_check
      _
    $region11: #{tpu_custom_call.1} parent=1 // pred_check_branch
      %14 = sbr.rel (0) target = $region13
    $region12: #{tpu_custom_call.1} parent=1 // pred_region
      _
    $region13: #{tpu_custom_call.1} parent=1 // pred_fallthru
      _
    %p15 = scmp.eq.s32.totalorder 0, 0
    // Predicated region
    $region14: #{tpu_custom_call.1} parent=1 // pred_check
      %p16 = pneg %p15
    $region15: #{tpu_custom_call.1} parent=1 // pred_check_branch
      %18 = sbr.rel (%p16) target = $region17
    $region16: #{tpu_custom_call.1} parent=1 // pred_region
      %vm19 = vcmask 7168
      %20 = vst.msk [vmem:[#allocation2] sm:$0xff] %vm19, -inf
      %21 = vst.msk [vmem:[#allocation3] sm:$0xff] %vm19, 0.0
      %22 = vst.msk [vmem:[#allocation4] sm:$0xff] %vm19, 0.0
    $region17: #{tpu_custom_call.1} parent=1 // pred_fallthru
      _
    %v23 = vld [vmem:[%s1] sm:$0xff]
    %v24 = vld [vmem:[%s2] sm:$0xff]
    %v25 = vld [vmem:[%s2 + $0x8] sm:$0xff]
    %v26 = vld [vmem:[%s2 + $0x10] sm:$0xff]
    %v27 = vld [vmem:[%s2 + $0x18] sm:$0xff]
    %v28 = vld [vmem:[%s2 + $0x20] sm:$0xff]
    %v29 = vld [vmem:[%s2 + $0x28] sm:$0xff]
    %v30 = vld [vmem:[%s2 + $0x30] sm:$0xff]
    %v31 = vld [vmem:[%s2 + $0x38] sm:$0xff]
    %v32 = vld [vmem:[%s2 + $0x40] sm:$0xff]
    %v33 = vld [vmem:[%s2 + $0x48] sm:$0xff]
    %v34 = vld [vmem:[%s2 + $0x50] sm:$0xff]
    %v35 = vld [vmem:[%s2 + $0x58] sm:$0xff]
    %v36 = vld [vmem:[%s2 + $0x60] sm:$0xff]
    %v37 = vld [vmem:[%s2 + $0x68] sm:$0xff]
    %v38 = vld [vmem:[%s2 + $0x70] sm:$0xff]
    %v39 = vld [vmem:[%s2 + $0x78] sm:$0xff]
    %v40 = vmul.f32 %v24, %v24
    %v41 = vmul.f32 %v25, %v25
    %v42 = vmul.f32 %v26, %v26
    %v43 = vmul.f32 %v27, %v27
    %v44 = vmul.f32 %v28, %v28
    %v45 = vmul.f32 %v29, %v29
    %v46 = vmul.f32 %v30, %v30
    %v47 = vmul.f32 %v31, %v31
    %v48 = vmul.f32 %v32, %v32
    %v49 = vmul.f32 %v33, %v33
    %v50 = vmul.f32 %v34, %v34
    %v51 = vmul.f32 %v35, %v35
    %v52 = vmul.f32 %v36, %v36
    %v53 = vmul.f32 %v37, %v37
    %v54 = vmul.f32 %v38, %v38
    %v55 = vmul.f32 %v39, %v39
    %vm56 = vcmask 261120
    %v58 = vsel %vm56, 1.0, 0
    %v61 = vsel %vm56, %v40, 0
    %v64 = vsel %vm56, %v41, 0
    %v67 = vsel %vm56, %v42, 0
    %v70 = vsel %vm56, %v43, 0
    %v73 = vsel %vm56, %v44, 0
    %v76 = vsel %vm56, %v45, 0
    %v79 = vsel %vm56, %v46, 0
    %v82 = vsel %vm56, %v47, 0
    %v85 = vsel %vm56, %v48, 0
    %v88 = vsel %vm56, %v49, 0
    %v91 = vsel %vm56, %v50, 0
    %v94 = vsel %vm56, %v51, 0
    %v97 = vsel %vm56, %v52, 0
    %v100 = vsel %vm56, %v53, 0
    %v103 = vsel %vm56, %v54, 0
    %v106 = vsel %vm56, %v55, 0
    %108 = vmatpush.xpose.msra.mxu0 %v106
    %109 = vmatpush.xpose.msra.mxu0 %v103
    %110 = vmatpush.xpose.msra.mxu0 %v100
    %111 = vmatpush.xpose.msra.mxu0 %v97
    %112 = vmatpush.xpose.msra.mxu0 %v94
    %113 = vmatpush.xpose.msra.mxu0 %v91
    %114 = vmatpush.xpose.msra.mxu0 %v88
    %115 = vmatpush.xpose.msra.mxu0 %v85
    %116 = vmatpush.xpose.msra.mxu0 %v82
    %117 = vmatpush.xpose.msra.mxu0 %v79
    %118 = vmatpush.xpose.msra.mxu0 %v76
    %119 = vmatpush.xpose.msra.mxu0 %v73
    %120 = vmatpush.xpose.msra.mxu0 %v70
    %121 = vmatpush.xpose.msra.mxu0 %v67
    %122 = vmatpush.xpose.msra.mxu0 %v64
    %123 = vmatpush.xpose.msra.mxu0 %v61
    %124 = vmatmul.f32.gmra.mxu0 %v58
    %v125 = vpop.f32.mrf.mxu0
    %v126 = vadd.f32 0.0, %v125
    %127 = vdwg.mxu0
    %v128 = vmax.f32 %v126, 1e-24
    %v129 = vrsqrt.pop %v128
    %v130 = vmul.f32 %v129, %v128
    %v131 = vmul.f32 %v130, %v129
    %v132 = vmul.f32 0.5, %v131
    %v133 = vsub.f32 1.5, %v132
    %v134 = vmul.f32 %v129, %v133
    %vm135 = vweird.f32 %v128
    %vm136 = vweird.f32 %v129
    %vm137 = vmor %vm135, %vm136
    %v138 = vsel %vm137, %v129, %v134
    %v139 = vmul.f32 %v138, 20.0
    %v141 = vsel %vm56, %v23, 0
    %v144 = vsel %vm56, %v24, 0
    %v147 = vsel %vm56, %v25, 0
    %v150 = vsel %vm56, %v26, 0
    %v153 = vsel %vm56, %v27, 0
    %v156 = vsel %vm56, %v28, 0
    %v159 = vsel %vm56, %v29, 0
    %v162 = vsel %vm56, %v30, 0
    %v165 = vsel %vm56, %v31, 0
    %v168 = vsel %vm56, %v32, 0
    %v171 = vsel %vm56, %v33, 0
    %v174 = vsel %vm56, %v34, 0
    %v177 = vsel %vm56, %v35, 0
    %v180 = vsel %vm56, %v36, 0
    %v183 = vsel %vm56, %v37, 0
    %v186 = vsel %vm56, %v38, 0
    %v189 = vsel %vm56, %v39, 0
    %191 = vmatpush.xpose.msra.mxu0 %v189
    %192 = vmatpush.xpose.msra.mxu0 %v186
    %193 = vmatpush.xpose.msra.mxu0 %v183
    %194 = vmatpush.xpose.msra.mxu0 %v180
    %195 = vmatpush.xpose.msra.mxu0 %v177
    %196 = vmatpush.xpose.msra.mxu0 %v174
    %197 = vmatpush.xpose.msra.mxu0 %v171
    %198 = vmatpush.xpose.msra.mxu0 %v168
    %199 = vmatpush.xpose.msra.mxu0 %v165
    %200 = vmatpush.xpose.msra.mxu0 %v162
    %201 = vmatpush.xpose.msra.mxu0 %v159
    %202 = vmatpush.xpose.msra.mxu0 %v156
    %203 = vmatpush.xpose.msra.mxu0 %v153
    %204 = vmatpush.xpose.msra.mxu0 %v150
    %205 = vmatpush.xpose.msra.mxu0 %v147
    %206 = vmatpush.xpose.msra.mxu0 %v144
    %207 = vmatmul.f32.gmra.mxu0 %v141
    %v208 = vpop.f32.mrf.mxu0
    %v209 = vadd.f32 0.0, %v208
    %210 = vdwg.mxu0
    %v211 = vperm.slane %v139, 0
    %v212 = vmul.f32 %v209, %v211
    %v213 = vlaneseq
    %v214 = vand.u32 %v213, 127
    %s215 = smul.u32 0, 128
    %v216 = vstv %s215
    %v217 = vadd.s32 %v214, %v216
    %vm218 = vcmp.lt.s32.totalorder %v217, 16
    %v219 = vsel %vm218, %v212, -inf
    %v220 = vld [vmem:[%s0] sm:$0xff]
    %v221 = vld [vmem:[#allocation4] sm:$0xff]
    %222 = vset.pattern.permute.xlu0 0
    %223 = vperm.xlu0 %222, %v220
    %v224 = vpop.permute.xlu0 %223
    %vm225 = vcmp.eq.s32.totalorder %v217, %v224
    %v226 = vsel %vm225, %v219, 0.0
    %227 = vadd.xlane.f32.xlu0 %v226
    %v228 = vpop.xlane.xlu0 %227
    %v229 = vadd.f32 %v221, %v228
    %vm230 = vcmask 7168
    %231 = vst.msk [vmem:[#allocation4] sm:$0xff] %vm230, %v229
    %v232 = vld [vmem:[#allocation2] sm:$0xff]
    %233 = vmax.xlane.f32.xlu0 %v219
    %v234 = vpop.xlane.xlu0 %233
    %v235 = vmax.f32 %v232, %v234
    %v236 = vsub.f32 %v232, %v235
    %v237 = vmul.f32 %v236, 1.442695
    %v238 = vpow.pop %v237
    %v239 = vld [vmem:[#allocation3] sm:$0xff]
    %v240 = vmul.f32 %v238, %v239
    %242 = vset.pattern.permute.xlu0 0
    %243 = vperm.xlu0 %242, %v235
    %v244 = vpop.permute.xlu0 %243
    %v246 = vsub.f32 %v219, %v244
    %v247 = vmul.f32 %v246, 1.442695
    %v248 = vpow.pop %v247
    %249 = vadd.xlane.f32.xlu0 %v248
    %v250 = vpop.xlane.xlu0 %249
    %v251 = vadd.f32 %v240, %v250
    %252 = vst.msk [vmem:[#allocation3] sm:$0xff] %vm230, %v251
    %253 = vst.msk [vmem:[#allocation2] sm:$0xff] %vm230, %v235
    // Predicated region
    $region18: #{tpu_custom_call.1} parent=1 // pred_check
      %p254 = pneg %p15
    $region19: #{tpu_custom_call.1} parent=1 // pred_check_branch
      %256 = sbr.rel (%p254) target = $region21
    $region20: #{tpu_custom_call.1} parent=1 // pred_region
      %v257 = vld [vmem:[#allocation2] sm:$0xff]
      %v258 = vld [vmem:[#allocation3] sm:$0xff]
      %v259 = vlog2.pop %v258
      %v260 = vmul.f32 %v259, 0.6931472
      %v261 = vadd.f32 %v257, %v260
      %v262 = vld [vmem:[#allocation4] sm:$0xff]
      %v263 = vsub.f32 %v261, %v262
      %265 = vset.pattern.permute.xlu0 0
      %266 = vperm.xlu0 %265, %v263
      %v267 = vpop.permute.xlu0 %266
      %269 = vst [vmem:[#allocation5] sm:$0xff] %v267
    $region21: #{tpu_custom_call.1} parent=1 // pred_fallthru
      _
    // Predicated region
    $region22: #{tpu_custom_call.1} parent=1 // pred_check
      _
    $region23: #{tpu_custom_call.1} parent=1 // pred_check_branch
      %271 = sbr.rel (0) target = $region25
    $region24: #{tpu_custom_call.1} parent=1 // pred_region
      %273 = vsyncadd [#allocation6], 0
      %s275 = sshll.u32 [#allocation5], 4
      %s276 = int_to_ptr.vmem [resolvable:$true] %s275
      %s277 = sshll.u32 %s3, 4
      %s278 = int_to_ptr.hbm [resolvable:$true] %s277
      %280 = dma.vmem_to_hbm [thread:$0]  %s276, 128, %s278, [#allocation6]
    $region25: #{tpu_custom_call.1} parent=1 // pred_fallthru
      _
    // Predicated region
    $region26: #{tpu_custom_call.1} parent=1 // pred_check
      _
    $region27: #{tpu_custom_call.1} parent=1 // pred_check_branch
      %282 = sbr.rel (0) target = $region29
    $region28: #{tpu_custom_call.1} parent=1 // pred_region
      %284 = dma.done [#allocation6], 128
    $region29: #{tpu_custom_call.1} parent=1 // pred_fallthru
      _
    %285 = vsyncpa [#allocation6], 1

</llo_original>
